<compile_context>
chip_gen: v6e
topology: v6e:2x2x1
jax: 0.10.0
libtpu: 0.0.40
codegen_flags: <defaults>
</compile_context>

<pallas_src>
import math
import functools

import jax
import jax.numpy as jnp
from jax import lax
from jax.experimental import pallas as pl
from jax.experimental.pallas import tpu as pltpu


def _round_up(n, k):
    return ((n + k - 1) // k) * k


def _arcface_kernel(xn_ref, w_ref, winv_ref, label_ref, out_ref, *,
                    s, s_cos_m, s_sin_m, th, s_mm, block_c):
    j = pl.program_id(0)  # class-tile index (outermost grid axis)

    # Cosine tile on the MXU: bf16 inputs, f32 accumulation, then the per-class
    # inverse-norm scaling (post-matmul normalization of W).
    cosine = jnp.dot(xn_ref[...], w_ref[...],
                     preferred_element_type=jnp.float32)          # (TB, TC)
    cosine = cosine * winv_ref[...]                               # (1, TC) broadcast

    # ArcFace margin math (f32 epilogue), with `s` folded into the constants.
    sine = jnp.sqrt(jnp.clip(1.0 - cosine * cosine, 0.0, 1.0))    # sqrt rides the EUP
    cosine_s = cosine * s
    phi_s = jnp.where(cosine > th,
                      cosine * s_cos_m - sine * s_sin_m,
                      cosine_s - s_mm)

    # output[i, label[i]] = phi[i, label[i]]  — compare against GLOBAL column ids.
    col_ids = j * block_c + lax.broadcasted_iota(jnp.int32, cosine.shape, 1)
    is_label = col_ids == label_ref[...]                          # (TB,1) -> (TB,TC)
    out_ref[...] = jnp.where(is_label, phi_s, cosine_s).astype(out_ref.dtype)


def arcface_forward(x, weight, label, *, s=30.0, m=0.5, block_b=256, block_c=1024):
    """x: (B, E), weight: (C, E), label: (B,) int -> (B, C) float32 ArcFace logits."""
    B, E = x.shape
    C, E2 = weight.shape
    assert E == E2, "embedding size mismatch"

    cos_m = math.cos(m)
    sin_m = math.sin(m)
    th = math.cos(math.pi - m)
    mm = math.sin(math.pi - m) * m

    # Tile sizes: TB multiple of 8, TC multiple of 128, clipped to the rounded-up
    # problem size.  E kept un-tiled, padded to a multiple of 128.
    tb = min(block_b, _round_up(B, 8))
    tc = min(block_c, _round_up(C, 128))
    Bp = _round_up(B, tb)
    Cp = _round_up(C, tc)
    Ep = _round_up(E, 128)

    # --- one-time input prep (outside the kernel) ---------------------------
    # F.normalize(x): x / max(||x||, 1e-12) == x * rsqrt(max(sumsq, 1e-24)).
    xf = x.astype(jnp.float32)
    x_inv = lax.rsqrt(jnp.maximum(jnp.sum(xf * xf, axis=-1, keepdims=True), 1e-24))
    xn = (xf * x_inv).astype(jnp.bfloat16)                         # (B, E) bf16

    # Per-class inverse norms (applied post-matmul inside the kernel).
    wf = weight.astype(jnp.float32)
    w_inv = lax.rsqrt(jnp.maximum(jnp.sum(wf * wf, axis=-1), 1e-24)).reshape(1, C)

    # TODO(synk): for a persistent parameter, hoist this transpose/cast/pad (and
    # w_inv) to parameter-setup time instead of doing it per forward call.
    w_t = weight.T.astype(jnp.bfloat16)                            # (E, C) bf16

    # Zero padding is exact for both the dot and the norms (no NaNs: rsqrt clamped).
    if (Bp, Ep) != (B, E):
        xn = jnp.pad(xn, ((0, Bp - B), (0, Ep - E)))
    if (Ep, Cp) != (E, C):
        w_t = jnp.pad(w_t, ((0, Ep - E), (0, Cp - C)))
    if Cp != C:
        w_inv = jnp.pad(w_inv, ((0, 0), (0, Cp - C)))
    label2d = label.astype(jnp.int32).reshape(B, 1)
    if Bp != B:
        label2d = jnp.pad(label2d, ((0, Bp - B), (0, 0)))

    grid_c = Cp // tc
    grid_b = Bp // tb
    grid = (grid_c, grid_b)   # class axis OUTERMOST -> each W tile fetched once

    kernel = functools.partial(
        _arcface_kernel, s=s, s_cos_m=s * cos_m, s_sin_m=s * sin_m,
        th=th, s_mm=s * mm, block_c=tc)

    # VMEM budget: double-buffered bf16 x tile, bf16 W tile, f32 w_inv row,
    # labels, and the f32 output tile (+ headroom).  Capped well under physical
    # VMEM on all generations (v7x has 64 MiB).
    buf_bytes = 2 * (tb * Ep * 2 + Ep * tc * 2 + tc * 4 + tb * 4 + tb * tc * 4)
    vmem_limit = int(min(max(32 * 1024 * 1024, 2 * buf_bytes), 96 * 1024 * 1024))

    out = pl.pallas_call(
        kernel,
        out_shape=jax.ShapeDtypeStruct((Bp, Cp), jnp.float32),
        grid=grid,
        in_specs=[
            pl.BlockSpec((tb, Ep), lambda j, i: (i, 0)),   # normalized x rows (bf16)
            pl.BlockSpec((Ep, tc), lambda j, i: (0, j)),   # W^T tile: constant across i
            pl.BlockSpec((1, tc), lambda j, i: (0, j)),    # per-class inv-norms (f32)
            pl.BlockSpec((tb, 1), lambda j, i: (i, 0)),    # labels for this batch tile
        ],
        out_specs=pl.BlockSpec((tb, tc), lambda j, i: (i, j)),
        compiler_params=pltpu.CompilerParams(
            dimension_semantics=("parallel", "parallel"),
            vmem_limit_bytes=vmem_limit,
        ),
        cost_estimate=pl.CostEstimate(
            flops=2 * Bp * Cp * Ep,
            transcendentals=Bp * Cp,
            bytes_accessed=(grid_c * Bp * Ep * 2      # x refetched per class tile (bf16)
                            + Ep * Cp * 2             # W fetched once (bf16)
                            + Cp * 4                  # w_inv (f32)
                            + grid_c * Bp * 4         # labels per class tile
                            + Bp * Cp * 4),           # output store (f32)
        ),
    )(xn, w_t, w_inv, label2d)

    return out[:B, :C]


def _xavier_uniform(key, shape):
    # nn.init.xavier_uniform_ for a (fan_out, fan_in) matrix
    fan_out, fan_in = shape
    limit = math.sqrt(6.0 / (fan_in + fan_out))
    return jax.random.uniform(key, shape, jnp.float32, -limit, limit)


def _reference_f32(x, weight, label, s=30.0, m=0.5):
    cos_m, sin_m = math.cos(m), math.sin(m)
    th = math.cos(math.pi - m)
    mm = math.sin(math.pi - m) * m
    xn = x * lax.rsqrt(jnp.maximum(jnp.sum(x * x, -1, keepdims=True), 1e-24))
    wn = weight * lax.rsqrt(jnp.maximum(jnp.sum(weight * weight, -1, keepdims=True), 1e-24))
    cosine = jnp.dot(xn, wn.T, preferred_element_type=jnp.float32)
    sine = jnp.sqrt(jnp.clip(1.0 - cosine ** 2, 0.0, 1.0))
    phi = cosine * cos_m - sine * sin_m
    phi = jnp.where(cosine > th, phi, cosine - mm)
    onehot = jax.nn.one_hot(label, weight.shape[0], dtype=bool)
    return jnp.where(onehot, phi, cosine) * s


def _reference_bf16_like_kernel(x, weight, label, s=30.0, m=0.5):
    # Mirrors the kernel's quantization exactly: bf16 normalized x, bf16
    # UN-normalized W^T, f32-accumulated dot, post-matmul per-class inv-norm.
    cos_m, sin_m = math.cos(m), math.sin(m)
    th = math.cos(math.pi - m)
    mm = math.sin(math.pi - m) * m
    xn = (x * lax.rsqrt(jnp.maximum(jnp.sum(x * x, -1, keepdims=True), 1e-24))
          ).astype(jnp.bfloat16)
    w_inv = lax.rsqrt(jnp.maximum(jnp.sum(weight * weight, -1), 1e-24))
    cosine = jnp.dot(xn, weight.T.astype(jnp.bfloat16),
                     preferred_element_type=jnp.float32) * w_inv[None, :]
    sine = jnp.sqrt(jnp.clip(1.0 - cosine ** 2, 0.0, 1.0))
    phi = cosine * cos_m - sine * sin_m
    phi = jnp.where(cosine > th, phi, cosine - mm)
    onehot = jax.nn.one_hot(label, weight.shape[0], dtype=bool)
    return jnp.where(onehot, phi, cosine) * s


if __name__ == "__main__":
    B, E, C = 16, 128, 512          # batch, embedding_size, class_num (small demo)
    key = jax.random.PRNGKey(0)
    kx, kw, kl = jax.random.split(key, 3)

    x = jax.random.normal(kx, (B, E), jnp.float32)
    weight = _xavier_uniform(kw, (C, E))                # (class_num, embedding_size)
    label = jax.random.randint(kl, (B,), 0, C, jnp.int32)

    # Small tiles so the demo exercises a (2, 2) grid, including the
    # global-column-offset path of the label scatter.
    out = arcface_forward(x, weight, label, s=30.0, m=0.5, block_b=8, block_c=256)
    out = jax.block_until_ready(out)

    ref_bf16 = _reference_bf16_like_kernel(x, weight, label, s=30.0, m=0.5)
    ref_f32 = _reference_f32(x, weight, label, s=30.0, m=0.5)

    assert out.shape == (B, C)
    assert jnp.allclose(out, ref_bf16, atol=5e-3, rtol=5e-3), "mismatch vs bf16-matmul reference"
    assert jnp.allclose(out, ref_f32, atol=1e-1, rtol=5e-2), "mismatch vs f32 reference"

    print("KERNEL_OK")
</pallas_src>

<mosaic_0001>
module attributes {stable_mosaic.version = 11 : i64} {
  func.func @_arcface_kernel(%arg0: i32, %arg1: i32, %arg2: memref<8x128xbf16, #tpu.memory_space<vmem>>, %arg3: memref<128x256xbf16, #tpu.memory_space<vmem>>, %arg4: memref<1x256xf32, #tpu.memory_space<vmem>>, %arg5: memref<8x1xi32, #tpu.memory_space<vmem>>, %arg6: memref<8x256xf32, #tpu.memory_space<vmem>>) attributes {dimension_semantics = [#tpu.dimension_semantics<parallel>, #tpu.dimension_semantics<parallel>], iteration_bounds = array<i64: 2, 2>, scalar_prefetch = 0 : i64, scratch_operands = 0 : i64, tpu.core_type = #tpu.core_type<tc>, window_params = [{transform_indices = @transform_0, window_bounds = array<i64: 8, 128>}, {transform_indices = @transform_1, window_bounds = array<i64: 128, 256>}, {transform_indices = @transform_2, window_bounds = array<i64: 1, 256>}, {transform_indices = @transform_3, window_bounds = array<i64: 8, 1>}, {transform_indices = @transform_4, window_bounds = array<i64: 8, 256>}]} {
    %c0 = arith.constant 0 : index
    %c0_0 = arith.constant 0 : index
    %0 = vector.load %arg2[%c0, %c0_0] : memref<8x128xbf16, #tpu.memory_space<vmem>>, vector<8x128xbf16>
    %c0_1 = arith.constant 0 : index
    %c0_2 = arith.constant 0 : index
    %1 = vector.load %arg3[%c0_1, %c0_2] : memref<128x256xbf16, #tpu.memory_space<vmem>>, vector<128x256xbf16>
    %cst = arith.constant dense<0.000000e+00> : vector<8x256xf32>
    %2 = tpu.matmul %0, %1, %cst {dimension_numbers = #tpu.dot_dimension_numbers<[1], [0], [0], [1], [0, 0, 1, 1], [], []>} : vector<8x128xbf16>, vector<128x256xbf16>, vector<8x256xf32> -> vector<8x256xf32>
    %c0_3 = arith.constant 0 : index
    %c0_4 = arith.constant 0 : index
    %3 = vector.load %arg4[%c0_3, %c0_4] : memref<1x256xf32, #tpu.memory_space<vmem>>, vector<1x256xf32>
    %4 = vector.broadcast %3 : vector<1x256xf32> to vector<8x256xf32>
    %5 = arith.mulf %2, %4 : vector<8x256xf32>
    %6 = arith.mulf %5, %5 : vector<8x256xf32>
    %cst_5 = arith.constant 1.000000e+00 : f32
    %7 = vector.broadcast %cst_5 : f32 to vector<8x256xf32>
    %8 = arith.subf %7, %6 : vector<8x256xf32>
    %cst_6 = arith.constant 0.000000e+00 : f32
    %cst_7 = arith.constant 1.000000e+00 : f32
    %9 = vector.broadcast %cst_6 : f32 to vector<8x256xf32>
    %10 = arith.maximumf %9, %8 : vector<8x256xf32>
    %11 = vector.broadcast %cst_7 : f32 to vector<8x256xf32>
    %12 = arith.minimumf %11, %10 : vector<8x256xf32>
    %13 = math.sqrt %12 : vector<8x256xf32>
    %cst_8 = arith.constant 3.000000e+01 : f32
    %14 = vector.broadcast %cst_8 : f32 to vector<8x256xf32>
    %15 = arith.mulf %5, %14 : vector<8x256xf32>
    %cst_9 = arith.constant -0.87758255 : f32
    %16 = vector.broadcast %cst_9 : f32 to vector<8x256xf32>
    %17 = arith.cmpf ogt, %5, %16 : vector<8x256xf32>
    %cst_10 = arith.constant 26.3274765 : f32
    %18 = vector.broadcast %cst_10 : f32 to vector<8x256xf32>
    %19 = arith.mulf %5, %18 : vector<8x256xf32>
    %cst_11 = arith.constant 14.3827658 : f32
    %20 = vector.broadcast %cst_11 : f32 to vector<8x256xf32>
    %21 = arith.mulf %13, %20 : vector<8x256xf32>
    %22 = arith.subf %19, %21 : vector<8x256xf32>
    %cst_12 = arith.constant 7.19138288 : f32
    %23 = vector.broadcast %cst_12 : f32 to vector<8x256xf32>
    %24 = arith.subf %15, %23 : vector<8x256xf32>
    %25 = arith.select %17, %22, %24 : vector<8x256xi1>, vector<8x256xf32>
    %c256_i32 = arith.constant 256 : i32
    %26 = arith.muli %arg0, %c256_i32 : i32
    %27 = tpu.iota {dimensions = array<i32: 1>} : vector<8x256xi32>
    %28 = vector.broadcast %26 : i32 to vector<8x256xi32>
    %29 = arith.addi %28, %27 : vector<8x256xi32>
    %c0_13 = arith.constant 0 : index
    %c0_14 = arith.constant 0 : index
    %30 = vector.load %arg5[%c0_13, %c0_14] : memref<8x1xi32, #tpu.memory_space<vmem>>, vector<8x1xi32>
    %31 = vector.broadcast %30 : vector<8x1xi32> to vector<8x256xi32>
    %32 = arith.cmpi eq, %29, %31 : vector<8x256xi32>
    %33 = arith.select %32, %25, %15 : vector<8x256xi1>, vector<8x256xf32>
    %c0_15 = arith.constant 0 : index
    %c0_16 = arith.constant 0 : index
    %34 = vector.load %arg6[%c0_15, %c0_16] : memref<8x256xf32, #tpu.memory_space<vmem>>, vector<8x256xf32>
    tpu.vector_store %arg6[%c0_15, %c0_16], %33 {strides = array<i32>} : memref<8x256xf32, #tpu.memory_space<vmem>>, vector<8x256xf32>,
    return
  }
  func.func @transform_0(%arg0: i32, %arg1: i32) -> (i32, i32) {
    %c0_i32 = arith.constant 0 : i32
    %c0_i32_0 = arith.constant 0 : i32
    return %arg1, %c0_i32 : i32, i32
  }
  func.func @transform_1(%arg0: i32, %arg1: i32) -> (i32, i32) {
    %c0_i32 = arith.constant 0 : i32
    %c0_i32_0 = arith.constant 0 : i32
    return %c0_i32, %arg0 : i32, i32
  }
  func.func @transform_2(%arg0: i32, %arg1: i32) -> (i32, i32) {
    %c0_i32 = arith.constant 0 : i32
    %c0_i32_0 = arith.constant 0 : i32
    return %c0_i32, %arg0 : i32, i32
  }
  func.func @transform_3(%arg0: i32, %arg1: i32) -> (i32, i32) {
    %c0_i32 = arith.constant 0 : i32
    %c0_i32_0 = arith.constant 0 : i32
    return %arg1, %c0_i32 : i32, i32
  }
  func.func @transform_4(%arg0: i32, %arg1: i32) -> (i32, i32) {
    %c0_i32 = arith.constant 0 : i32
    return %arg1, %arg0 : i32, i32
  }
}

</mosaic_0001>

<llo_original>
// kernel: tpu_custom_call.1
$region0: #{tpu_custom_call.1}
  #allocation0 [shape = 'u32[]', space=smem, size = 0x4, offset = 0x4, fixed_abs, tag = 'smem constant byte address 0x4 - core index']
  #allocation1 [shape = 'u32[144,128]{1,0:T(1,128)}', space=vmem, size = 0x12000, scoped, tag = 'internal scratch']
  %s0 = inlined_call_operand.vmem [shape: bf16[16,128], index: 0, kind: input, shape index: {}]
  %s1 = inlined_call_operand.hbm [shape: bf16[128,512], index: 1, kind: input, shape index: {}]
  %s2 = inlined_call_operand.vmem [shape: f32[1,512], index: 2, kind: input, shape index: {}]
  %s3 = inlined_call_operand.vmem [shape: s32[16,1], index: 3, kind: input, shape index: {}]
  %s4 = inlined_call_operand.hbm [shape: f32[16,512], index: 4, kind: output, shape index: {}]
  %s5 = sld [smem:[#allocation0]]
  $region53: #{tpu_custom_call.1} parent=0
    _
  %s7 = ssub.s32 1, %s5
  %s8 = scalar_select 0, %s7, %s5
  $region1: #{tpu_custom_call.1} parent=0
    #allocation2 [shape = 'u8[131072]{0}', space=vmem, size = 0x20000, scoped, tag = 'input window, operand 1']
    #allocation3 [shape = 's32[2]{0}', space=sflag, size = 0x8, scoped, tag = 'scoped memory for tpu_custom_call.1']
    #allocation4 [shape = 's32[2]{0}', space=sflag, size = 0x8, scoped, tag = 'scoped memory for tpu_custom_call.1']
    #allocation5 [shape = 'u8[16384]{0}', space=vmem, size = 0x4000, scoped, tag = 'output window, operand 0']
    %9 = vsyncpa [#allocation3], 0
    %s10 = scalar_lea.sflag [#allocation3], 1
    %11 = vsyncpa %s10, 0
    %12 = vsyncpa [#allocation4], 0
    %s13 = scalar_lea.sflag [#allocation4], 1
    %14 = vsyncpa %s13, 0
    loop: start=0, step=1, limit=6
    $region2: #{tpu_custom_call.1} parent=1 // loop_pre_header
      _
    $region3: #{tpu_custom_call.1} parent=1 // loop_header
      %s16 = sphi 0, %s20
      %p17 = scmp.ge.s32.totalorder %s16, 6
      %s23 = sphi 0, %s35
      %s24 = sphi 0, %s31
      %s25 = sphi 0, %s23
      %s26 = sphi 0, %s24
      %s27 = sphi 0, %s25
      %s28 = sphi 0, %s26
      %s38 = sphi 0, %s40
      %s41 = sphi 0, %s38
      %s42 = sphi 0, %s41
      %s58 = sphi 0, %s42
      %s64 = sphi 0, %s66
      %s67 = sphi 0, %s64
      %s68 = sphi 0, %s67
      %s84 = sphi 0, %s68
      %s90 = sphi 0, %s92
      %s93 = sphi 0, %s90
      %s94 = sphi 0, %s93
      %s110 = sphi 0, %s94
      %s116 = sphi 0, %s118
      %s119 = sphi 0, %s116
      %s120 = sphi 0, %s119
      %s136 = sphi 0, %s120
      %s144 = sphi 0, %s146
      %s147 = sphi 0, %s144
      %s148 = sphi 0, %s147
      %s164 = sphi 0, %s148
    $region4: #{tpu_custom_call.1} parent=1 // loop_header_branch
      %19 = sbr.rel (%p17) target = $region8
    $region5: #{tpu_custom_call.1} parent=1 // loop_body
      %s21 = ssub.s32 %s16, 1
      %s22 = ssub.s32 %s16, 2
      %s29 = sadd.s32 1, %s24
      %p30 = scmp.ge.s32.totalorder %s29, 2
      %s31 = scalar_select %p30, 0, %s29
      %s32 = sadd.s32 1, %s23
      %s33 = scalar_select %p30, %s32, %s23
      %p34 = scmp.ge.s32.totalorder %s33, 2
      %s35 = scalar_select %p34, 0, %s33
      %s36 = ssub.s32 %s24, %s31
      %p37 = scmp.eq.s32.totalorder %s36, 0
      %s39 = sadd.s32 %s38, 1
      %s40 = scalar_select %p37, %s38, %s39
      %p43 = pneg %p37
      %p44 = scmp.eq.s32.totalorder %s16, 3
      %p45 = por %p43, %p44
      %p46 = scmp.ne.s32.totalorder %s38, %s41
      %p47 = scmp.eq.s32.totalorder %s16, 0
      %p48 = por %p46, %p47
      %p49 = scmp.ne.s32.totalorder %s38, %s41
      %p50 = scmp.eq.s32.totalorder %s21, 3
      %p51 = por %p49, %p50
      %p52 = scmp.ne.s32.totalorder %s41, %s42
      %p53 = scmp.eq.s32.totalorder %s21, 0
      %p54 = por %p52, %p53
      %p55 = scmp.ne.s32.totalorder %s41, %s42
      %p56 = scmp.eq.s32.totalorder %s22, 3
      %p57 = por %p55, %p56
      %p59 = scmp.ne.s32.totalorder %s42, %s58
      %p60 = scmp.eq.s32.totalorder %s22, 0
      %p61 = por %p59, %p60
      %s62 = ssub.s32 %s23, %s35
      %p63 = scmp.eq.s32.totalorder %s62, 0
      %s65 = sadd.s32 %s64, 1
      %s66 = scalar_select %p63, %s64, %s65
      %p69 = pneg %p63
      %p70 = scmp.eq.s32.totalorder %s16, 3
      %p71 = por %p69, %p70
      %p72 = scmp.ne.s32.totalorder %s64, %s67
      %p73 = scmp.eq.s32.totalorder %s16, 0
      %p74 = por %p72, %p73
      %p75 = scmp.ne.s32.totalorder %s64, %s67
      %p76 = scmp.eq.s32.totalorder %s21, 3
      %p77 = por %p75, %p76
      %p78 = scmp.ne.s32.totalorder %s67, %s68
      %p79 = scmp.eq.s32.totalorder %s21, 0
      %p80 = por %p78, %p79
      %p81 = scmp.ne.s32.totalorder %s67, %s68
      %p82 = scmp.eq.s32.totalorder %s22, 3
      %p83 = por %p81, %p82
      %p85 = scmp.ne.s32.totalorder %s68, %s84
      %p86 = scmp.eq.s32.totalorder %s22, 0
      %p87 = por %p85, %p86
      %s88 = ssub.s32 %s23, %s35
      %p89 = scmp.eq.s32.totalorder %s88, 0
      %s91 = sadd.s32 %s90, 1
      %s92 = scalar_select %p89, %s90, %s91
      %p95 = pneg %p89
      %p96 = scmp.eq.s32.totalorder %s16, 3
      %p97 = por %p95, %p96
      %p98 = scmp.ne.s32.totalorder %s90, %s93
      %p99 = scmp.eq.s32.totalorder %s16, 0
      %p100 = por %p98, %p99
      %p101 = scmp.ne.s32.totalorder %s90, %s93
      %p102 = scmp.eq.s32.totalorder %s21, 3
      %p103 = por %p101, %p102
      %p104 = scmp.ne.s32.totalorder %s93, %s94
      %p105 = scmp.eq.s32.totalorder %s21, 0
      %p106 = por %p104, %p105
      %p107 = scmp.ne.s32.totalorder %s93, %s94
      %p108 = scmp.eq.s32.totalorder %s22, 3
      %p109 = por %p107, %p108
      %p111 = scmp.ne.s32.totalorder %s94, %s110
      %p112 = scmp.eq.s32.totalorder %s22, 0
      %p113 = por %p111, %p112
      %s114 = ssub.s32 %s24, %s31
      %p115 = scmp.eq.s32.totalorder %s114, 0
      %s117 = sadd.s32 %s116, 1
      %s118 = scalar_select %p115, %s116, %s117
      %p121 = pneg %p115
      %p122 = scmp.eq.s32.totalorder %s16, 3
      %p123 = por %p121, %p122
      %p124 = scmp.ne.s32.totalorder %s116, %s119
      %p125 = scmp.eq.s32.totalorder %s16, 0
      %p126 = por %p124, %p125
      %p127 = scmp.ne.s32.totalorder %s116, %s119
      %p128 = scmp.eq.s32.totalorder %s21, 3
      %p129 = por %p127, %p128
      %p130 = scmp.ne.s32.totalorder %s119, %s120
      %p131 = scmp.eq.s32.totalorder %s21, 0
      %p132 = por %p130, %p131
      %p133 = scmp.ne.s32.totalorder %s119, %s120
      %p134 = scmp.eq.s32.totalorder %s22, 3
      %p135 = por %p133, %p134
      %p137 = scmp.ne.s32.totalorder %s120, %s136
      %p138 = scmp.eq.s32.totalorder %s22, 0
      %p139 = por %p137, %p138
      %s140 = ssub.s32 %s24, %s31
      %s141 = ssub.s32 %s23, %s35
      %s142 = sor.u32 %s140, %s141
      %p143 = scmp.eq.s32.totalorder %s142, 0
      %s145 = sadd.s32 %s144, 1
      %s146 = scalar_select %p143, %s144, %s145
      %p149 = pneg %p143
      %p150 = scmp.eq.s32.totalorder %s16, 3
      %p151 = por %p149, %p150
      %p152 = scmp.ne.s32.totalorder %s144, %s147
      %p153 = scmp.eq.s32.totalorder %s16, 0
      %p154 = por %p152, %p153
      %p155 = scmp.ne.s32.totalorder %s144, %s147
      %p156 = scmp.eq.s32.totalorder %s21, 3
      %p157 = por %p155, %p156
      %p158 = scmp.ne.s32.totalorder %s147, %s148
      %p159 = scmp.eq.s32.totalorder %s21, 0
      %p160 = por %p158, %p159
      %p161 = scmp.ne.s32.totalorder %s147, %s148
      %p162 = scmp.eq.s32.totalorder %s22, 3
      %p163 = por %p161, %p162
      %p165 = scmp.ne.s32.totalorder %s148, %s164
      %p166 = scmp.eq.s32.totalorder %s22, 0
      %p167 = por %p165, %p166
      %p168 = scmp.le.s32.totalorder 1, %s16
      %p169 = scmp.lt.s32.totalorder %s16, 5
      %p170 = pnand %p168, %p169
      %p171 = pneg %p170
      // Predicated region
      $region9: #{tpu_custom_call.1} parent=5 // pred_check
        _
      $region10: #{tpu_custom_call.1} parent=5 // pred_check_branch
        %173 = sbr.rel (%p170) target = $region12
      $region11: #{tpu_custom_call.1} parent=5 // pred_region
        %s174 = ssub.s32 %s16, 1
      $region12: #{tpu_custom_call.1} parent=5 // pred_fallthru
        _
      %p175 = scmp.lt.s32.totalorder %s16, 4
      // Predicated region
      $region13: #{tpu_custom_call.1} parent=5 // pred_check
        %p176 = pneg %p175
      $region14: #{tpu_custom_call.1} parent=5 // pred_check_branch
        %178 = sbr.rel (%p176) target = $region16
      $region15: #{tpu_custom_call.1} parent=5 // pred_region
        // Predicated region
        $region17: #{tpu_custom_call.1} parent=15 // pred_check
          %p179 = pneg %p48
        $region18: #{tpu_custom_call.1} parent=15 // pred_check_branch
          %181 = sbr.rel (%p179) target = $region20
        $region19: #{tpu_custom_call.1} parent=15 // pred_region
          %p182 = scmp.lt.s32.totalorder %s24, 1
          %s183 = scalar_select %p182, %s24, 1
          %s184 = smul.addr %s183, 4
          %s185 = scalar_lea.vmem %s0, %s184
        $region20: #{tpu_custom_call.1} parent=15 // pred_fallthru
          _
        // Predicated region
        $region21: #{tpu_custom_call.1} parent=15 // pred_check
          %p186 = pneg %p74
        $region22: #{tpu_custom_call.1} parent=15 // pred_check_branch
          %188 = sbr.rel (%p186) target = $region24
        $region23: #{tpu_custom_call.1} parent=15 // pred_region
          %s189 = sand.u32 %s64, 1
          %s190 = scalar_lea.sflag [#allocation3], %s189
          %s191 = sand.u32 %s64, 1
          %s192 = smul.addr %s191, 128
          %s193 = scalar_lea.vmem [#allocation2], %s192
          %s194 = smul.u32 2, %s23
          %s196 = ssub.s32 2048, 2048
          %197 = vsyncadd %s190, %s196
          %s198 = smul.addr %s194, 64
          %s199 = scalar_lea.hbm %s1, %s198
          %s200 = sshll.u32 %s193, 4
          %s201 = int_to_ptr.vmem [resolvable:$true] %s200
          %206 = dma.hbm_to_vmem [thread:$0]  %s199, 2048, %s201, %s190, 256, 128, 8
        $region24: #{tpu_custom_call.1} parent=15 // pred_fallthru
          _
        // Predicated region
        $region25: #{tpu_custom_call.1} parent=15 // pred_check
          %p207 = pneg %p100
        $region26: #{tpu_custom_call.1} parent=15 // pred_check_branch
          %209 = sbr.rel (%p207) target = $region28
        $region27: #{tpu_custom_call.1} parent=15 // pred_region
          %s210 = smul.u32 2, %s23
          %p211 = scmp.lt.s32.totalorder %s210, 3
          %s212 = scalar_select %p211, %s210, 3
          %s213 = scalar_lea.vmem %s2, %s212
          %s214 = smul.u32 2, %s23
        $region28: #{tpu_custom_call.1} parent=15 // pred_fallthru
          _
        // Predicated region
        $region29: #{tpu_custom_call.1} parent=15 // pred_check
          %p215 = pneg %p126
        $region30: #{tpu_custom_call.1} parent=15 // pred_check_branch
          %217 = sbr.rel (%p215) target = $region32
        $region31: #{tpu_custom_call.1} parent=15 // pred_region
          %p218 = scmp.lt.s32.totalorder %s24, 1
          %s219 = scalar_select %p218, %s24, 1
          %s220 = smul.addr %s219, 8
          %s221 = scalar_lea.vmem %s3, %s220
        $region32: #{tpu_custom_call.1} parent=15 // pred_fallthru
          _
      $region16: #{tpu_custom_call.1} parent=5 // pred_fallthru
        _
      %p222 = scmp.le.s32.totalorder 1, %s16
      %p223 = scmp.lt.s32.totalorder %s16, 5
      %p224 = pnand %p222, %p223
      %p225 = pneg %p224
      // Predicated region
      $region33: #{tpu_custom_call.1} parent=5 // pred_check
        _
      $region34: #{tpu_custom_call.1} parent=5 // pred_check_branch
        %227 = sbr.rel (%p224) target = $region36
      $region35: #{tpu_custom_call.1} parent=5 // pred_region
        %s228 = ssub.s32 %s16, 1
        %s229 = sand.u32 %s67, 1
        %s230 = scalar_lea.sflag [#allocation3], %s229
        %s231 = sand.u32 %s67, 1
        %s232 = smul.addr %s231, 128
        %s233 = scalar_lea.vmem [#allocation2], %s232
        // Predicated region
        $region37: #{tpu_custom_call.1} parent=35 // pred_check
          %p234 = pneg %p80
        $region38: #{tpu_custom_call.1} parent=35 // pred_check_branch
          %236 = sbr.rel (%p234) target = $region40
        $region39: #{tpu_custom_call.1} parent=35 // pred_region
          %237 = dma.done %s230, 2048
        $region40: #{tpu_custom_call.1} parent=35 // pred_fallthru
          _
        %p238 = scmp.lt.s32.totalorder %s26, 1
        %s239 = scalar_select %p238, %s26, 1
        %s240 = smul.addr %s239, 4
        %s241 = scalar_lea.vmem %s0, %s240
        %p242 = pneg %p54
        %p243 = pneg %p51
        %s244 = sand.u32 %s67, 1
        %s245 = scalar_lea.sflag [#allocation3], %s244
        %s246 = sand.u32 %s67, 1
        %s247 = smul.addr %s246, 128
        %s248 = scalar_lea.vmem [#allocation2], %s247
        %p249 = pneg %p80
        %p250 = pneg %p77
        %s251 = smul.u32 2, %s25
        %p252 = scmp.lt.s32.totalorder %s251, 3
        %s253 = scalar_select %p252, %s251, 3
        %s254 = scalar_lea.vmem %s2, %s253
        %p255 = pneg %p106
        %p256 = pneg %p103
        %p257 = scmp.lt.s32.totalorder %s26, 1
        %s258 = scalar_select %p257, %s26, 1
        %s259 = smul.addr %s258, 8
        %s260 = scalar_lea.vmem %s3, %s259
        %p261 = pneg %p132
        %p262 = pneg %p129
        %p263 = pneg %p160
        %p264 = pneg %p157
        %s265 = sand.u32 %s147, 1
        %s266 = scalar_lea.sflag [#allocation4], %s265
        %s267 = sand.u32 %s147, 1
        %s268 = smul.addr %s267, 16
        %s269 = scalar_lea.vmem [#allocation5], %s268
        %p270 = scmp.lt.s32.totalorder %s26, 1
        %s271 = scalar_select %p270, %s26, 1
        %s272 = smul.addr %s271, 4
        %s273 = scalar_lea.vmem %s0, %s272
        %s274 = smul.u32 2, %s25
        %s275 = smul.u32 2, %s25
        %p276 = scmp.lt.s32.totalorder %s275, 3
        %s277 = scalar_select %p276, %s275, 3
        %s278 = scalar_lea.vmem %s2, %s277
        %s279 = smul.u32 2, %s25
        %p280 = scmp.lt.s32.totalorder %s26, 1
        %s281 = scalar_select %p280, %s26, 1
        %s282 = smul.addr %s281, 8
        %s283 = scalar_lea.vmem %s3, %s282
        %s284 = smul.u32 2, %s25
        %v286 = vld [vmem:[%s273] sm:$0xf]
        %v287 = vld [vmem:[%s233] sm:$0xff]
        %v288 = vld [vmem:[%s233 + $0x8] sm:$0xff]
        %v289 = vld [vmem:[%s233 + $0x10] sm:$0xff]
        %v290 = vld [vmem:[%s233 + $0x18] sm:$0xff]
        %v291 = vld [vmem:[%s233 + $0x20] sm:$0xff]
        %v292 = vld [vmem:[%s233 + $0x28] sm:$0xff]
        %v293 = vld [vmem:[%s233 + $0x30] sm:$0xff]
        %v294 = vld [vmem:[%s233 + $0x38] sm:$0xff]
        %v295 = vld [vmem:[%s233 + $0x40] sm:$0xff]
        %v296 = vld [vmem:[%s233 + $0x48] sm:$0xff]
        %v297 = vld [vmem:[%s233 + $0x50] sm:$0xff]
        %v298 = vld [vmem:[%s233 + $0x58] sm:$0xff]
        %v299 = vld [vmem:[%s233 + $0x60] sm:$0xff]
        %v300 = vld [vmem:[%s233 + $0x68] sm:$0xff]
        %v301 = vld [vmem:[%s233 + $0x70] sm:$0xff]
        %v302 = vld [vmem:[%s233 + $0x78] sm:$0xff]
        %v319 = vunpack.c.l.b16 %v287
        %v320 = vunpack.c.h.b16 %v287
        %v321 = vunpack.c.l.b16 %v288
        %v322 = vunpack.c.h.b16 %v288
        %v323 = vunpack.c.l.b16 %v289
        %v324 = vunpack.c.h.b16 %v289
        %v325 = vunpack.c.l.b16 %v290
        %v326 = vunpack.c.h.b16 %v290
        %v327 = vunpack.c.l.b16 %v291
        %v328 = vunpack.c.h.b16 %v291
        %v329 = vunpack.c.l.b16 %v292
        %v330 = vunpack.c.h.b16 %v292
        %v331 = vunpack.c.l.b16 %v293
        %v332 = vunpack.c.h.b16 %v293
        %v333 = vunpack.c.l.b16 %v294
        %v334 = vunpack.c.h.b16 %v294
        %v335 = vunpack.c.l.b16 %v295
        %v336 = vunpack.c.h.b16 %v295
        %v337 = vunpack.c.l.b16 %v296
        %v338 = vunpack.c.h.b16 %v296
        %v339 = vunpack.c.l.b16 %v297
        %v340 = vunpack.c.h.b16 %v297
        %v341 = vunpack.c.l.b16 %v298
        %v342 = vunpack.c.h.b16 %v298
        %v343 = vunpack.c.l.b16 %v299
        %v344 = vunpack.c.h.b16 %v299
        %v345 = vunpack.c.l.b16 %v300
        %v346 = vunpack.c.h.b16 %v300
        %v347 = vunpack.c.l.b16 %v301
        %v348 = vunpack.c.h.b16 %v301
        %v349 = vunpack.c.l.b16 %v302
        %v350 = vunpack.c.h.b16 %v302
        %v351 = vpack.c.b16 %v321, %v319
        %v352 = vpack.c.b16 %v322, %v320
        %v353 = vpack.c.b16 %v325, %v323
        %v354 = vpack.c.b16 %v326, %v324
        %v355 = vpack.c.b16 %v329, %v327
        %v356 = vpack.c.b16 %v330, %v328
        %v357 = vpack.c.b16 %v333, %v331
        %v358 = vpack.c.b16 %v334, %v332
        %v359 = vpack.c.b16 %v337, %v335
        %v360 = vpack.c.b16 %v338, %v336
        %v361 = vpack.c.b16 %v341, %v339
        %v362 = vpack.c.b16 %v342, %v340
        %v363 = vpack.c.b16 %v345, %v343
        %v364 = vpack.c.b16 %v346, %v344
        %v365 = vpack.c.b16 %v349, %v347
        %v366 = vpack.c.b16 %v350, %v348
        %383 = vmatprep.subr.bf16.mxu0 %v366
        %384 = vmatpush1.bf16.msra.mxu0 %v365
        %385 = vmatprep.subr.bf16.mxu0 %v364
        %386 = vmatpush1.bf16.msra.mxu0 %v363
        %387 = vmatprep.subr.bf16.mxu0 %v362
        %388 = vmatpush1.bf16.msra.mxu0 %v361
        %389 = vmatprep.subr.bf16.mxu0 %v360
        %390 = vmatpush1.bf16.msra.mxu0 %v359
        %391 = vmatprep.subr.bf16.mxu0 %v358
        %392 = vmatpush1.bf16.msra.mxu0 %v357
        %393 = vmatprep.subr.bf16.mxu0 %v356
        %394 = vmatpush1.bf16.msra.mxu0 %v355
        %395 = vmatprep.subr.bf16.mxu0 %v354
        %396 = vmatpush1.bf16.msra.mxu0 %v353
        %397 = vmatprep.subr.bf16.mxu0 %v352
        %398 = vmatpush1.bf16.msra.mxu0 %v351
        %399 = vmatprep.subr.bf16.mxu0 0
        %400 = vmatpush2.bf16.msra.mxu0 0
        %401 = vmatprep.subr.bf16.mxu0 0
        %402 = vmatpush2.bf16.msra.mxu0 0
        %403 = vmatprep.subr.bf16.mxu0 0
        %404 = vmatpush2.bf16.msra.mxu0 0
        %405 = vmatprep.subr.bf16.mxu0 0
        %406 = vmatpush2.bf16.msra.mxu0 0
        %407 = vmatprep.subr.bf16.mxu0 0
        %408 = vmatpush2.bf16.msra.mxu0 0
        %409 = vmatprep.subr.bf16.mxu0 0
        %410 = vmatpush2.bf16.msra.mxu0 0
        %411 = vmatprep.subr.bf16.mxu0 0
        %412 = vmatpush2.bf16.msra.mxu0 0
        %413 = vmatprep.subr.bf16.mxu0 0
        %414 = vmatpush2.bf16.msra.mxu0 0
        %415 = vmatprep.mubr.bf16.mxu0 0
        %416 = vmatmul.mubr.bf16.gmra.mxu0 %v286
        %v417 = vpop.f32.mrf.mxu0
        %v418 = vadd.f32 0.0, %v417
        %v419 = vpop.f32.mrf.mxu0
        %v420 = vadd.f32 0.0, %v419
        %v421 = vpop.f32.mrf.mxu0
        %v422 = vpop.f32.mrf.mxu0
        %423 = vdwg.mxu0
        %v424 = vld [vmem:[%s278] sm:$0x3]
        %v426 = vlaneseq
        %v427 = vshrl.u32 %v426, 7
        %v428 = vsub.s32 0, %v427
        %v429 = vrot.slane %v424, %v428
        %v430 = vlaneseq
        %v431 = vshrl.u32 %v430, 7
        %v432 = vsub.s32 1, %v431
        %v433 = vrot.slane %v424, %v432
        %v436 = vmul.f32 %v418, %v429
        %v437 = vmul.f32 %v420, %v433
        %v438 = vmul.f32 %v436, %v436
        %v439 = vmul.f32 %v437, %v437
        %v440 = vsub.f32 1.0, %v438
        %v441 = vsub.f32 1.0, %v439
        %v442 = vmax.f32 %v440, 0.0
        %v443 = vmax.f32 %v441, 0.0
        %v444 = vmin.f32 %v442, 1.0
        %v445 = vmin.f32 %v443, 1.0
        %v446 = vrsqrt.pop %v444
        %v447 = vmul.f32 %v444, %v446
        %vm448 = vcmp.eq.f32.partialorder %v444, inf
        %v449 = vsel %vm448, %v444, %v447
        %vm450 = vcmp.eq.f32.partialorder %v444, 0.0
        %v451 = vand.u32 %v444, 2147483648
        %v452 = vsel %vm450, %v451, %v449
        %v453 = vrsqrt.pop %v445
        %v454 = vmul.f32 %v445, %v453
        %vm455 = vcmp.eq.f32.partialorder %v445, inf
        %v456 = vsel %vm455, %v445, %v454
        %vm457 = vcmp.eq.f32.partialorder %v445, 0.0
        %v458 = vand.u32 %v445, 2147483648
        %v459 = vsel %vm457, %v458, %v456
        %v460 = vmul.f32 %v436, 30.0
        %v461 = vmul.f32 %v437, 30.0
        %vm462 = vcmp.gt.f32.partialorder %v436, -0.87758255
        %vm463 = vcmp.gt.f32.partialorder %v437, -0.87758255
        %v464 = vmul.f32 %v436, 26.327477
        %v465 = vmul.f32 %v437, 26.327477
        %v466 = vmul.f32 %v452, 14.382766
        %v467 = vmul.f32 %v459, 14.382766
        %v468 = vsub.f32 %v464, %v466
        %v469 = vsub.f32 %v465, %v467
        %v470 = vsub.f32 %v460, 7.191383
        %v471 = vsub.f32 %v461, 7.191383
        %v472 = vsel %vm462, %v468, %v470
        %v473 = vsel %vm463, %v469, %v471
        %s474 = smul.u32 %s25, 256
        %v475 = vlaneseq
        %v476 = vand.u32 %v475, 127
        %v477 = vadd.s32 %v476, 128
        %v478 = vstv %s474
        %v479 = vadd.s32 %v478, %v476
        %v480 = vadd.s32 %v478, %v477
        %v481 = vld [vmem:[%s283] sm:$0xff]
        %482 = vset.pattern.permute.xlu0 0
        %483 = vperm.xlu0 %482, %v481
        %v484 = vpop.permute.xlu0 %483
        %vm485 = vcmp.eq.s32.totalorder %v479, %v484
        %vm486 = vcmp.eq.s32.totalorder %v480, %v484
        %v487 = vsel %vm485, %v472, %v460
        %v488 = vsel %vm486, %v473, %v461
        %489 = vst [vmem:[%s269] sm:$0xff] %v487
        %490 = vst [vmem:[%s269 + $0x8] sm:$0xff] %v488
        %s491 = sand.u32 %s147, 1
        %s492 = scalar_lea.sflag [#allocation4], %s491
        %s493 = sand.u32 %s147, 1
        %s494 = smul.addr %s493, 16
        %s495 = scalar_lea.vmem [#allocation5], %s494
        // Predicated region
        $region41: #{tpu_custom_call.1} parent=35 // pred_check
          %p496 = pneg %p157
        $region42: #{tpu_custom_call.1} parent=35 // pred_check_branch
          %498 = sbr.rel (%p496) target = $region44
        $region43: #{tpu_custom_call.1} parent=35 // pred_region
          %s499 = smul.u32 2, %s25
          %s501 = ssub.s32 256, 256
          %502 = vsyncadd %s492, %s501
          %s503 = smul.addr %s26, 4
          %s504 = sadd.s32 %s499, %s503
          %s505 = smul.addr %s504, 128
          %s506 = scalar_lea.hbm %s4, %s505
          %s508 = sshll.u32 %s495, 4
          %s509 = int_to_ptr.vmem [resolvable:$true] %s508
          %511 = dma.vmem_to_hbm [thread:$0]  %s509, 256, %s506, %s492
        $region44: #{tpu_custom_call.1} parent=35 // pred_fallthru
          _
      $region36: #{tpu_custom_call.1} parent=5 // pred_fallthru
        _
      %p512 = scmp.le.s32.totalorder 2, %s16
      // Predicated region
      $region45: #{tpu_custom_call.1} parent=5 // pred_check
        %p513 = pneg %p512
      $region46: #{tpu_custom_call.1} parent=5 // pred_check_branch
        %515 = sbr.rel (%p513) target = $region48
      $region47: #{tpu_custom_call.1} parent=5 // pred_region
        %s516 = ssub.s32 %s16, 2
        // Predicated region
        $region49: #{tpu_custom_call.1} parent=47 // pred_check
          %p517 = pneg %p163
        $region50: #{tpu_custom_call.1} parent=47 // pred_check_branch
          %519 = sbr.rel (%p517) target = $region52
        $region51: #{tpu_custom_call.1} parent=47 // pred_region
          %s520 = sand.u32 %s148, 1
          %s521 = scalar_lea.sflag [#allocation4], %s520
          %s522 = sand.u32 %s148, 1
          %s523 = smul.addr %s522, 16
          %s524 = scalar_lea.vmem [#allocation5], %s523
          %525 = dma.done %s521, 256
        $region52: #{tpu_custom_call.1} parent=47 // pred_fallthru
          _
      $region48: #{tpu_custom_call.1} parent=5 // pred_fallthru
        _
    $region6: #{tpu_custom_call.1} parent=1 // loop_footer
      %s20 = sadd.s32 1, %s16
    $region7: #{tpu_custom_call.1} parent=1 // loop_footer_branch
      %15 = sbr.rel target = $region3
    $region8: #{tpu_custom_call.1} parent=1 // loop_exit
      _
    %526 = vsyncpa [#allocation3], 1
    %s527 = scalar_lea.sflag [#allocation3], 1
    %528 = vsyncpa %s527, 1
    %529 = vsyncpa [#allocation4], 1
    %s530 = scalar_lea.sflag [#allocation4], 1
    %531 = vsyncpa %s530, 1

</llo_original>
